<compile_context>
chip_gen: v7x
topology: tpu7x:2x2x1
jax: 0.10.0
libtpu: 0.0.40
codegen_flags: <defaults>
</compile_context>

<pallas_src>
import jax
import jax.numpy as jnp
from jax.experimental import pallas as pl
from jax.experimental.pallas import tpu as pltpu

F32 = jnp.float32
BF16 = jnp.bfloat16
LIF_BETA = 0.9          # snn.Leaky(beta=0.9); one step from a zero membrane
LIF_THRESHOLD = 1.0     # snn.Leaky default threshold
_VMEM_LIMIT = 40 * 1024 * 1024   # conservative for v7x's 64 MiB physical VMEM


def _round_up(x, m):
    return ((x + m - 1) // m) * m


def _geom(h, w, kh, kw, stride, pad):
    ho = (h + 2 * pad - kh) // stride + 1
    wo = (w + 2 * pad - kw) // stride + 1
    return ho, wo


def _tiles(ho, wo, cout):
    """Output tile geometry: ~512-1024 output pixels per grid step."""
    tw = _round_up(max(wo, 1), 16)
    budget = 512 if cout >= 512 else 1024
    trows = max(1, min(ho, max(1, budget // tw)))
    ho_pad = _round_up(ho, trows)
    return tw, trows, ho_pad


def _phase_layout(x, kh, kw, stride, pad, tw, ho_pad):
    """Pad + space-to-depth so every tap of a strided conv/pool reads a
    contiguous, statically shifted window; one HBM pass over the activation."""
    n, h, w, c = x.shape
    s = stride
    hp, wp = h + 2 * pad, w + 2 * pad
    hq, wq = -(-hp // s), -(-wp // s)
    qi_max, qj_max = (kh - 1) // s, (kw - 1) // s
    hq_pad = max(hq, ho_pad + qi_max)
    wq_pad = _round_up(max(wq, qj_max + tw), 8)
    xp = jnp.pad(x, ((0, 0),
                     (pad, pad + hq * s - hp),
                     (pad, pad + wq * s - wp),
                     (0, 0)))
    xr = xp.reshape(n, hq, s, wq, s, c).transpose(0, 2, 4, 1, 3, 5)
    xr = jnp.pad(xr, ((0, 0), (0, 0), (0, 0),
                      (0, hq_pad - hq), (0, wq_pad - wq), (0, 0)))
    return xr.reshape(n, s * s * hq_pad, wq_pad, c), hq_pad, wq_pad


# ----------------------------- Pallas kernels --------------------------------

def _make_conv3x3_kernel(*, kh, kw, s, hq_pad, trows, tw, cin, grouped,
                         apply_lif, has_res):
    """Tap-walking conv + folded BN (+ residual) (+ LIF spike).

    grouped=True folds the kw taps of one kernel row into the contraction dim
    (K = kw*cin) so small-cin layers still fill the MXU depth."""

    def compute(x_ref, w_ref, sc_ref, bi_ref, res_ref, out_ref):
        m = pl.program_id(1)
        acc = None
        if grouped:
            for di in range(kh):
                parts = []
                for dj in range(kw):
                    ph = (di % s) * s + (dj % s)      # space-to-depth phase
                    qi, qj = di // s, dj // s         # offset inside phase
                    row = ph * hq_pad + m * trows + qi
                    parts.append(x_ref[pl.ds(row, trows), pl.ds(qj, tw), :])
                a = parts[0] if kw == 1 else jnp.concatenate(parts, axis=-1)
                a = a.reshape(trows * tw, kw * cin)
                d = jnp.dot(a, w_ref[di], preferred_element_type=jnp.float32)
                acc = d if acc is None else acc + d
        else:
            for di in range(kh):
                for dj in range(kw):
                    ph = (di % s) * s + (dj % s)
                    qi, qj = di // s, dj // s
                    row = ph * hq_pad + m * trows + qi
                    a = x_ref[pl.ds(row, trows), pl.ds(qj, tw), :]
                    a = a.reshape(trows * tw, cin)
                    d = jnp.dot(a, w_ref[di * kw + dj],
                                preferred_element_type=jnp.float32)
                    acc = d if acc is None else acc + d

        y = acc * sc_ref[...] + bi_ref[...]            # folded BN affine (f32)
        if has_res:
            y = y + res_ref[...].reshape(trows * tw, -1).astype(jnp.float32)
        if apply_lif:
            # snn.Leaky, single step from a zero membrane:
            #   mem = beta*0 + y = y ; spk = heaviside(mem - threshold)
            y = (y > LIF_THRESHOLD).astype(jnp.float32)
        out_ref[...] = y.reshape(trows, tw, -1).astype(out_ref.dtype)

    if has_res:
        def kernel(x_ref, w_ref, sc_ref, bi_ref, res_ref, out_ref):
            compute(x_ref, w_ref, sc_ref, bi_ref, res_ref, out_ref)
    else:
        def kernel(x_ref, w_ref, sc_ref, bi_ref, out_ref):
            compute(x_ref, w_ref, sc_ref, bi_ref, None, out_ref)
    return kernel


def _make_pointwise_kernel(*, trows, tw, apply_lif):
    """Single matmul per tile: 1x1 conv (or im2col'd conv1) + folded BN (+LIF)."""

    def kernel(x_ref, w_ref, sc_ref, bi_ref, out_ref):
        a = x_ref[...].reshape(trows * tw, -1)
        y = jnp.dot(a, w_ref[...], preferred_element_type=jnp.float32)
        y = y * sc_ref[...] + bi_ref[...]
        if apply_lif:
            y = (y > LIF_THRESHOLD).astype(jnp.float32)
        out_ref[...] = y.reshape(trows, tw, -1).astype(out_ref.dtype)

    return kernel


def _make_pool_kernel(*, kh, kw, s, hq_pad, trows, tw):
    """MaxPool over kh*kw taps (zero padding is exact for non-negative spikes)."""

    def kernel(x_ref, o_ref):
        m = pl.program_id(1)
        acc = None
        for di in range(kh):
            for dj in range(kw):
                ph = (di % s) * s + (dj % s)
                qi, qj = di // s, dj // s
                row = ph * hq_pad + m * trows + qi
                a = x_ref[pl.ds(row, trows), pl.ds(qj, tw), :]
                acc = a if acc is None else jnp.maximum(acc, a)
        o_ref[...] = acc.astype(o_ref.dtype)

    return kernel


# ------------------------------- wrappers -------------------------------------
# Every stage returns (padded_buffer[n, ho_pad, tw, c] (bf16), ho, wo); the pad
# region carries don't-care values that are never read back as valid pixels.

def pointwise_conv_bn_lif(x, w2d, scale, bias, *, apply_lif, out_dtype=BF16):
    """1x1-conv-as-matmul + folded BN (+ LIF), row-tiled (no halo needed)."""
    n, ho, wo, k = x.shape
    cout = w2d.shape[-1]
    tw, trows, ho_pad = _tiles(ho, wo, cout)
    xp = jnp.pad(x.astype(BF16),
                 ((0, 0), (0, ho_pad - ho), (0, tw - wo), (0, 0)))
    sc = scale.reshape(1, cout).astype(F32)
    bi = bias.reshape(1, cout).astype(F32)
    kernel = _make_pointwise_kernel(trows=trows, tw=tw, apply_lif=apply_lif)
    out = pl.pallas_call(
        kernel,
        out_shape=jax.ShapeDtypeStruct((n, ho_pad, tw, cout), out_dtype),
        grid=(n, ho_pad // trows),
        in_specs=[
            pl.BlockSpec((None, trows, tw, k), lambda nb, mb: (nb, mb, 0, 0)),
            pl.BlockSpec((k, cout), lambda nb, mb: (0, 0)),
            pl.BlockSpec((1, cout), lambda nb, mb: (0, 0)),
            pl.BlockSpec((1, cout), lambda nb, mb: (0, 0)),
        ],
        out_specs=pl.BlockSpec((None, trows, tw, cout),
                               lambda nb, mb: (nb, mb, 0, 0)),
        compiler_params=pltpu.CompilerParams(
            dimension_semantics=("parallel", "parallel"),
            vmem_limit_bytes=_VMEM_LIMIT),
    )(xp, w2d.astype(BF16), sc, bi)
    return out, ho, wo


def conv3x3_bn_lif(xt, w, scale, bias, *, stride, residual=None,
                   apply_lif=True, out_dtype=BF16):
    """3x3 conv (no bias) + folded BN (+ padded-buffer residual) (+ LIF)."""
    buf, h, win = xt
    n = buf.shape[0]
    kh, kw, cin, cout = w.shape
    pad = 1
    ho, wo = _geom(h, win, kh, kw, stride, pad)
    tw, trows, ho_pad = _tiles(ho, wo, cout)
    x = buf[:, :h, :win, :].astype(BF16)
    xr, hq_pad, wq_pad = _phase_layout(x, kh, kw, stride, pad, tw, ho_pad)

    grouped = cin < 128            # fold the kw taps of a kernel row into K
    if grouped:
        w_blk = w.reshape(kh, kw * cin, cout).astype(BF16)
    else:
        w_blk = w.reshape(kh * kw, cin, cout).astype(BF16)
    sc = scale.reshape(1, cout).astype(F32)
    bi = bias.reshape(1, cout).astype(F32)

    inputs = [xr, w_blk, sc, bi]
    in_specs = [
        pl.BlockSpec((None, stride * stride * hq_pad, wq_pad, cin),
                     lambda nb, mb: (nb, 0, 0, 0)),
        pl.BlockSpec(w_blk.shape, lambda nb, mb: (0, 0, 0)),
        pl.BlockSpec((1, cout), lambda nb, mb: (0, 0)),
        pl.BlockSpec((1, cout), lambda nb, mb: (0, 0)),
    ]
    has_res = residual is not None
    if has_res:
        rbuf, rh, rw = residual
        assert (rh, rw) == (ho, wo) and rbuf.shape == (n, ho_pad, tw, cout), (
            rbuf.shape, (n, ho_pad, tw, cout))
        inputs.append(rbuf)
        in_specs.append(pl.BlockSpec((None, trows, tw, cout),
                                     lambda nb, mb: (nb, mb, 0, 0)))

    kernel = _make_conv3x3_kernel(kh=kh, kw=kw, s=stride, hq_pad=hq_pad,
                                  trows=trows, tw=tw, cin=cin, grouped=grouped,
                                  apply_lif=apply_lif, has_res=has_res)
    out = pl.pallas_call(
        kernel,
        out_shape=jax.ShapeDtypeStruct((n, ho_pad, tw, cout), out_dtype),
        grid=(n, ho_pad // trows),
        in_specs=in_specs,
        out_specs=pl.BlockSpec((None, trows, tw, cout),
                               lambda nb, mb: (nb, mb, 0, 0)),
        compiler_params=pltpu.CompilerParams(
            dimension_semantics=("parallel", "parallel"),
            vmem_limit_bytes=_VMEM_LIMIT),
    )(*inputs)
    return out, ho, wo


def maxpool_3x3_s2_p1(xt):
    """nn.MaxPool2d(3, 2, 1) on NHWC spikes (zero padding == -inf padding
    because spikes are non-negative)."""
    buf, h, w = xt
    x = buf[:, :h, :w, :]
    n, _, _, c = x.shape
    kh = kw = 3
    stride, pad = 2, 1
    ho, wo = _geom(h, w, kh, kw, stride, pad)
    tw, trows, ho_pad = _tiles(ho, wo, c)
    xr, hq_pad, wq_pad = _phase_layout(x, kh, kw, stride, pad, tw, ho_pad)
    kernel = _make_pool_kernel(kh=kh, kw=kw, s=stride, hq_pad=hq_pad,
                               trows=trows, tw=tw)
    out = pl.pallas_call(
        kernel,
        out_shape=jax.ShapeDtypeStruct((n, ho_pad, tw, c), buf.dtype),
        grid=(n, ho_pad // trows),
        in_specs=[pl.BlockSpec((None, stride * stride * hq_pad, wq_pad, c),
                               lambda nb, mb: (nb, 0, 0, 0))],
        out_specs=pl.BlockSpec((None, trows, tw, c),
                               lambda nb, mb: (nb, mb, 0, 0)),
        compiler_params=pltpu.CompilerParams(
            dimension_semantics=("parallel", "parallel"),
            vmem_limit_bytes=_VMEM_LIMIT),
    )(xr)
    return out, ho, wo


def _conv1_im2col(x, w, *, kh, kw, stride, pad):
    """Fold all kh*kw taps and the (small) input channels into the contraction
    dim so the stem conv is ONE dense MXU matmul per tile (K padded to 128)."""
    n, h, wd, c = x.shape
    ho, wo = _geom(h, wd, kh, kw, stride, pad)
    xp = jnp.pad(x, ((0, 0), (pad, pad), (pad, pad), (0, 0)))
    cols = []
    for di in range(kh):
        for dj in range(kw):
            cols.append(xp[:, di:di + stride * (ho - 1) + 1:stride,
                           dj:dj + stride * (wo - 1) + 1:stride, :])
    patches = jnp.concatenate(cols, axis=-1)            # (n, ho, wo, kh*kw*c)
    k = kh * kw * c
    k_pad = _round_up(k, 128)
    patches = jnp.pad(patches, ((0, 0), (0, 0), (0, 0), (0, k_pad - k)))
    w2d = jnp.pad(w.reshape(k, -1), ((0, k_pad - k), (0, 0)))
    return patches, w2d


def _downsample_1x1(xt, w, scale, bias, *, stride):
    """1x1 stride-s conv + folded BN (no LIF): subsample then pointwise matmul."""
    buf, ho, wo = xt
    x = buf[:, :ho, :wo, :]
    if stride > 1:
        x = x[:, ::stride, ::stride, :]
    w2d = w.reshape(w.shape[2], w.shape[3])
    return pointwise_conv_bn_lif(x, w2d, scale, bias, apply_lif=False)


# -------------------------- parameters & model -------------------------------

def _bn_params(key, c):
    k1, k2, k3, k4 = jax.random.split(key, 4)
    gamma = 1.0 + 0.1 * jax.random.normal(k1, (c,), F32)
    beta = 0.05 * jax.random.normal(k2, (c,), F32)
    mean = 0.05 * jax.random.normal(k3, (c,), F32)
    var = 1.0 + 0.1 * jnp.abs(jax.random.normal(k4, (c,), F32))
    eps = 1e-5
    scale = gamma / jnp.sqrt(var + eps)
    bias = beta - mean * scale
    return scale, bias


def _conv_w(key, kh, kw, cin, cout):
    fan_in = kh * kw * cin
    return jax.random.normal(key, (kh, kw, cin, cout), F32) * (2.0 / fan_in) ** 0.5


def init_encoder_params(key, layers=(2, 2, 2, 2), input_channels=2):
    keys = iter(jax.random.split(key, 256))
    params = {"conv1_w": _conv_w(next(keys), 7, 7, input_channels, 64),
              "bn1": _bn_params(next(keys), 64)}
    in_c = 64
    planes = (64, 128, 256, 512)
    strides = (1, 2, 2, 2)
    all_layers = []
    for li in range(4):
        blocks = []
        for bi in range(layers[li]):
            stride = strides[li] if bi == 0 else 1
            out_c = planes[li]
            blk = {"stride": stride,
                   "w1": _conv_w(next(keys), 3, 3, in_c, out_c),
                   "bn_a": _bn_params(next(keys), out_c),
                   "w2": _conv_w(next(keys), 3, 3, out_c, out_c),
                   "bn_b": _bn_params(next(keys), out_c)}
            if stride != 1 or in_c != out_c:         # downsample branch
                blk["wd"] = _conv_w(next(keys), 1, 1, in_c, out_c)
                blk["bn_d"] = _bn_params(next(keys), out_c)
            blocks.append(blk)
            in_c = out_c
        all_layers.append(blocks)
    params["layers"] = all_layers
    return params


def _block_forward(xt, blk):
    # TODO(synk): the residual `block` class is not defined in the provided
    # source; this implements the standard spiking BasicBlock
    # (conv3x3-bn-LIF -> conv3x3-bn -> + identity -> LIF, expansion = 1).
    stride = blk["stride"]
    s1, b1 = blk["bn_a"]
    spk1 = conv3x3_bn_lif(xt, blk["w1"], s1, b1, stride=stride, apply_lif=True)
    if "wd" in blk:
        sd, bd = blk["bn_d"]
        identity = _downsample_1x1(xt, blk["wd"], sd, bd, stride=stride)
    else:
        identity = xt       # padded bf16 buffer reused directly (no re-pad)
    s2, b2 = blk["bn_b"]
    spk2 = conv3x3_bn_lif(spk1, blk["w2"], s2, b2, stride=1,
                          residual=identity, apply_lif=True)
    return spk2


def snn_resnet_encoder_forward(x_nchw, params):
    """x_nchw: (N, C, H, W) like PyTorch; returns 4 NCHW feature maps (f32)."""
    x = jnp.transpose(x_nchw, (0, 2, 3, 1)).astype(F32)        # NCHW -> NHWC
    # conv1 7x7/s2/p3 (cin=2): fold taps+channels into K (98 -> 128)
    patches, w2d = _conv1_im2col(x, params["conv1_w"], kh=7, kw=7,
                                 stride=2, pad=3)
    s1, b1 = params["bn1"]
    spk = pointwise_conv_bn_lif(patches, w2d, s1, b1, apply_lif=True)
    out = maxpool_3x3_s2_p1(spk)
    # TODO(synk): the PyTorch forward threads `mem` through blocks whose feature
    # shapes differ (undefined for snn.Leaky); each LIF here starts from a zero
    # membrane and no membrane is returned (only spikes feed encoder_outputs).
    encoder_outputs = []
    for layer_blocks in params["layers"]:
        for blk in layer_blocks:
            out = _block_forward(out, blk)
        buf, ho_l, wo_l = out
        encoder_outputs.append(
            jnp.transpose(buf[:, :ho_l, :wo_l, :].astype(F32), (0, 3, 1, 2)))
    return encoder_outputs


if __name__ == "__main__":
    key = jax.random.PRNGKey(0)
    kp, kx = jax.random.split(key)
    params = init_encoder_params(kp, layers=(2, 2, 2, 2), input_channels=2)
    x = jax.random.normal(kx, (2, 2, 16, 16), F32) * 2.0       # NCHW like PyTorch
    outs = snn_resnet_encoder_forward(x, params)
    outs = jax.block_until_ready(outs)
    expected = [(2, 64, 4, 4), (2, 128, 2, 2), (2, 256, 1, 1), (2, 512, 1, 1)]
    assert [tuple(o.shape) for o in outs] == expected, \
        [tuple(o.shape) for o in outs]
    print("KERNEL_OK")
</pallas_src>

<mosaic_0001>
module attributes {stable_mosaic.version = 11 : i64} {
  func.func @kernel(%arg0: i32, %arg1: i32, %arg2: memref<1x8x16x128xbf16, #tpu.memory_space<vmem>>, %arg3: memref<128x64xbf16, #tpu.memory_space<vmem>>, %arg4: memref<1x64xf32, #tpu.memory_space<vmem>>, %arg5: memref<1x64xf32, #tpu.memory_space<vmem>>, %arg6: memref<1x8x16x64xbf16, #tpu.memory_space<vmem>>) attributes {dimension_semantics = [#tpu.dimension_semantics<parallel>, #tpu.dimension_semantics<parallel>], iteration_bounds = array<i64: 2, 1>, scalar_prefetch = 0 : i64, scratch_operands = 0 : i64, tpu.core_type = #tpu.core_type<tc>, window_params = [{transform_indices = @transform_0, window_bounds = array<i64: 1, 8, 16, 128>}, {pipeline_mode = #tpu.pipeline_mode<synchronous>, transform_indices = @transform_1, window_bounds = array<i64: 128, 64>}, {pipeline_mode = #tpu.pipeline_mode<synchronous>, transform_indices = @transform_2, window_bounds = array<i64: 1, 64>}, {pipeline_mode = #tpu.pipeline_mode<synchronous>, transform_indices = @transform_3, window_bounds = array<i64: 1, 64>}, {transform_indices = @transform_4, window_bounds = array<i64: 1, 8, 16, 64>}]} {
    %c0 = arith.constant 0 : index
    %c0_0 = arith.constant 0 : index
    %c0_1 = arith.constant 0 : index
    %c0_2 = arith.constant 0 : index
    %0 = vector.load %arg2[%c0, %c0_0, %c0_1, %c0_2] : memref<1x8x16x128xbf16, #tpu.memory_space<vmem>>, vector<1x8x16x128xbf16>
    %1 = vector.shape_cast %0 : vector<1x8x16x128xbf16> to vector<8x16x128xbf16>
    %2 = vector.shape_cast %1 : vector<8x16x128xbf16> to vector<128x128xbf16>
    %c0_3 = arith.constant 0 : index
    %c0_4 = arith.constant 0 : index
    %3 = vector.load %arg3[%c0_3, %c0_4] : memref<128x64xbf16, #tpu.memory_space<vmem>>, vector<128x64xbf16>
    %cst = arith.constant dense<0.000000e+00> : vector<128x64xf32>
    %4 = tpu.matmul %2, %3, %cst {dimension_numbers = #tpu.dot_dimension_numbers<[1], [0], [0], [1], [0, 0, 1, 1], [], []>} : vector<128x128xbf16>, vector<128x64xbf16>, vector<128x64xf32> -> vector<128x64xf32>
    %c0_5 = arith.constant 0 : index
    %c0_6 = arith.constant 0 : index
    %5 = vector.load %arg4[%c0_5, %c0_6] : memref<1x64xf32, #tpu.memory_space<vmem>>, vector<1x64xf32>
    %6 = vector.broadcast %5 : vector<1x64xf32> to vector<128x64xf32>
    %7 = arith.mulf %4, %6 : vector<128x64xf32>
    %c0_7 = arith.constant 0 : index
    %c0_8 = arith.constant 0 : index
    %8 = vector.load %arg5[%c0_7, %c0_8] : memref<1x64xf32, #tpu.memory_space<vmem>>, vector<1x64xf32>
    %9 = vector.broadcast %8 : vector<1x64xf32> to vector<128x64xf32>
    %10 = arith.addf %7, %9 : vector<128x64xf32>
    %cst_9 = arith.constant 1.000000e+00 : f32
    %11 = vector.broadcast %cst_9 : f32 to vector<128x64xf32>
    %12 = arith.cmpf ogt, %10, %11 : vector<128x64xf32>
    %13 = arith.extui %12 : vector<128x64xi1> to vector<128x64xi32>
    %14 = arith.sitofp %13 : vector<128x64xi32> to vector<128x64xf32>
    %15 = vector.shape_cast %14 : vector<128x64xf32> to vector<8x16x64xf32>
    %16 = arith.truncf %15 : vector<8x16x64xf32> to vector<8x16x64xbf16>
    %c0_10 = arith.constant 0 : index
    %c0_11 = arith.constant 0 : index
    %c0_12 = arith.constant 0 : index
    %c0_13 = arith.constant 0 : index
    %17 = vector.load %arg6[%c0_10, %c0_11, %c0_12, %c0_13] : memref<1x8x16x64xbf16, #tpu.memory_space<vmem>>, vector<1x8x16x64xbf16>
    %18 = vector.shape_cast %17 : vector<1x8x16x64xbf16> to vector<8x16x64xbf16>
    %19 = vector.shape_cast %16 : vector<8x16x64xbf16> to vector<1x8x16x64xbf16>
    tpu.vector_store %arg6[%c0_10, %c0_11, %c0_12, %c0_13], %19 {strides = array<i32>} : memref<1x8x16x64xbf16, #tpu.memory_space<vmem>>, vector<1x8x16x64xbf16>,
    return
  }
  func.func @transform_0(%arg0: i32, %arg1: i32) -> (i32, i32, i32, i32) {
    %c0_i32 = arith.constant 0 : i32
    %c0_i32_0 = arith.constant 0 : i32
    %c0_i32_1 = arith.constant 0 : i32
    return %arg0, %arg1, %c0_i32, %c0_i32_0 : i32, i32, i32, i32
  }
  func.func @transform_1(%arg0: i32, %arg1: i32) -> (i32, i32) {
    %c0_i32 = arith.constant 0 : i32
    %c0_i32_0 = arith.constant 0 : i32
    %c0_i32_1 = arith.constant 0 : i32
    return %c0_i32, %c0_i32_0 : i32, i32
  }
  func.func @transform_2(%arg0: i32, %arg1: i32) -> (i32, i32) {
    %c0_i32 = arith.constant 0 : i32
    %c0_i32_0 = arith.constant 0 : i32
    %c0_i32_1 = arith.constant 0 : i32
    return %c0_i32, %c0_i32_0 : i32, i32
  }
  func.func @transform_3(%arg0: i32, %arg1: i32) -> (i32, i32) {
    %c0_i32 = arith.constant 0 : i32
    %c0_i32_0 = arith.constant 0 : i32
    %c0_i32_1 = arith.constant 0 : i32
    return %c0_i32, %c0_i32_0 : i32, i32
  }
  func.func @transform_4(%arg0: i32, %arg1: i32) -> (i32, i32, i32, i32) {
    %c0_i32 = arith.constant 0 : i32
    %c0_i32_0 = arith.constant 0 : i32
    %c0_i32_1 = arith.constant 0 : i32
    return %arg0, %arg1, %c0_i32, %c0_i32_0 : i32, i32, i32, i32
  }
}

</mosaic_0001>

<llo_original>
// kernel: tpu_custom_call.1
$region0: #{tpu_custom_call.1}
  #allocation0 [shape = 'u32[]', space=smem, size = 0x4, offset = 0x4, fixed_abs, tag = 'smem constant byte address 0x4 - core index']
  #allocation1 [shape = 'u32[144,128]{1,0:T(1,128)}', space=vmem, size = 0x12000, scoped, tag = 'internal scratch']
  %s0 = inlined_call_operand.hbm [shape: bf16[2,8,16,128], index: 0, kind: input, shape index: {}]
  %s1 = inlined_call_operand.vmem [shape: bf16[128,64], index: 1, kind: input, shape index: {}]
  %s2 = inlined_call_operand.vmem [shape: f32[1,64], index: 2, kind: input, shape index: {}]
  %s3 = inlined_call_operand.vmem [shape: f32[1,64], index: 3, kind: input, shape index: {}]
  %s4 = inlined_call_operand.hbm [shape: bf16[2,8,16,64], index: 4, kind: output, shape index: {}]
  %s5 = sld [smem:[#allocation0]]
  $region53: #{tpu_custom_call.1} parent=0
    _
  %s7 = ssub.s32 1, %s5
  %s8 = scalar_select 0, %s7, %s5
  $region1: #{tpu_custom_call.1} parent=0
    #allocation2 [shape = 'u8[65536]{0}', space=vmem, size = 0x10000, scoped, tag = 'input window, operand 0']
    #allocation3 [shape = 's32[2]{0}', space=sflag, size = 0x8, scoped, tag = 'scoped memory for tpu_custom_call.1']
    #allocation4 [shape = 's32[2]{0}', space=sflag, size = 0x8, scoped, tag = 'scoped memory for tpu_custom_call.1']
    #allocation5 [shape = 'u8[65536]{0}', space=vmem, size = 0x10000, scoped, tag = 'output window, operand 0']
    %9 = vsyncpa [#allocation3], 0
    %s10 = scalar_lea.sflag [#allocation3], 1
    %11 = vsyncpa %s10, 0
    %12 = vsyncpa [#allocation4], 0
    %s13 = scalar_lea.sflag [#allocation4], 1
    %14 = vsyncpa %s13, 0
    loop: start=0, step=1, limit=4
    $region2: #{tpu_custom_call.1} parent=1 // loop_pre_header
      _
    $region3: #{tpu_custom_call.1} parent=1 // loop_header
      %s16 = sphi 0, %s20
      %p17 = scmp.ge.s32.totalorder %s16, 4
      %s23 = sphi 0, %s35
      %s24 = sphi 0, %s31
      %s25 = sphi 0, %s23
      %s26 = sphi 0, %s24
      %s27 = sphi 0, %s25
      %s28 = sphi 0, %s26
      %s40 = sphi 0, %s42
      %s43 = sphi 0, %s40
      %s44 = sphi 0, %s43
      %s60 = sphi 0, %s44
      %s64 = sphi 0, %s64
      %s66 = sphi 0, %s64
      %s67 = sphi 0, %s66
      %s81 = sphi 0, %s67
      %s85 = sphi 0, %s85
      %s87 = sphi 0, %s85
      %s88 = sphi 0, %s87
      %s102 = sphi 0, %s88
      %s106 = sphi 0, %s106
      %s108 = sphi 0, %s106
      %s109 = sphi 0, %s108
      %s123 = sphi 0, %s109
      %s131 = sphi 0, %s133
      %s134 = sphi 0, %s131
      %s135 = sphi 0, %s134
      %s151 = sphi 0, %s135
    $region4: #{tpu_custom_call.1} parent=1 // loop_header_branch
      %19 = sbr.rel (%p17) target = $region8
    $region5: #{tpu_custom_call.1} parent=1 // loop_body
      %s21 = ssub.s32 %s16, 1
      %s22 = ssub.s32 %s16, 2
      %s29 = sadd.s32 1, %s24
      %p30 = scmp.ge.s32.totalorder %s29, 1
      %s31 = scalar_select %p30, 0, %s29
      %s32 = sadd.s32 1, %s23
      %s33 = scalar_select %p30, %s32, %s23
      %p34 = scmp.ge.s32.totalorder %s33, 2
      %s35 = scalar_select %p34, 0, %s33
      %s36 = ssub.s32 %s23, %s35
      %s37 = ssub.s32 %s24, %s31
      %s38 = sor.u32 %s36, %s37
      %p39 = scmp.eq.s32.totalorder %s38, 0
      %s41 = sadd.s32 %s40, 1
      %s42 = scalar_select %p39, %s40, %s41
      %p45 = pneg %p39
      %p46 = scmp.eq.s32.totalorder %s16, 1
      %p47 = por %p45, %p46
      %p48 = scmp.ne.s32.totalorder %s40, %s43
      %p49 = scmp.eq.s32.totalorder %s16, 0
      %p50 = por %p48, %p49
      %p51 = scmp.ne.s32.totalorder %s40, %s43
      %p52 = scmp.eq.s32.totalorder %s21, 1
      %p53 = por %p51, %p52
      %p54 = scmp.ne.s32.totalorder %s43, %s44
      %p55 = scmp.eq.s32.totalorder %s21, 0
      %p56 = por %p54, %p55
      %p57 = scmp.ne.s32.totalorder %s43, %s44
      %p58 = scmp.eq.s32.totalorder %s22, 1
      %p59 = por %p57, %p58
      %p61 = scmp.ne.s32.totalorder %s44, %s60
      %p62 = scmp.eq.s32.totalorder %s22, 0
      %p63 = por %p61, %p62
      %s65 = sadd.s32 %s64, 1
      %p68 = scmp.eq.s32.totalorder %s16, 1
      %p69 = scmp.ne.s32.totalorder %s64, %s66
      %p70 = scmp.eq.s32.totalorder %s16, 0
      %p71 = por %p69, %p70
      %p72 = scmp.ne.s32.totalorder %s64, %s66
      %p73 = scmp.eq.s32.totalorder %s21, 1
      %p74 = por %p72, %p73
      %p75 = scmp.ne.s32.totalorder %s66, %s67
      %p76 = scmp.eq.s32.totalorder %s21, 0
      %p77 = por %p75, %p76
      %p78 = scmp.ne.s32.totalorder %s66, %s67
      %p79 = scmp.eq.s32.totalorder %s22, 1
      %p80 = por %p78, %p79
      %p82 = scmp.ne.s32.totalorder %s67, %s81
      %p83 = scmp.eq.s32.totalorder %s22, 0
      %p84 = por %p82, %p83
      %s86 = sadd.s32 %s85, 1
      %p89 = scmp.eq.s32.totalorder %s16, 1
      %p90 = scmp.ne.s32.totalorder %s85, %s87
      %p91 = scmp.eq.s32.totalorder %s16, 0
      %p92 = por %p90, %p91
      %p93 = scmp.ne.s32.totalorder %s85, %s87
      %p94 = scmp.eq.s32.totalorder %s21, 1
      %p95 = por %p93, %p94
      %p96 = scmp.ne.s32.totalorder %s87, %s88
      %p97 = scmp.eq.s32.totalorder %s21, 0
      %p98 = por %p96, %p97
      %p99 = scmp.ne.s32.totalorder %s87, %s88
      %p100 = scmp.eq.s32.totalorder %s22, 1
      %p101 = por %p99, %p100
      %p103 = scmp.ne.s32.totalorder %s88, %s102
      %p104 = scmp.eq.s32.totalorder %s22, 0
      %p105 = por %p103, %p104
      %s107 = sadd.s32 %s106, 1
      %p110 = scmp.eq.s32.totalorder %s16, 1
      %p111 = scmp.ne.s32.totalorder %s106, %s108
      %p112 = scmp.eq.s32.totalorder %s16, 0
      %p113 = por %p111, %p112
      %p114 = scmp.ne.s32.totalorder %s106, %s108
      %p115 = scmp.eq.s32.totalorder %s21, 1
      %p116 = por %p114, %p115
      %p117 = scmp.ne.s32.totalorder %s108, %s109
      %p118 = scmp.eq.s32.totalorder %s21, 0
      %p119 = por %p117, %p118
      %p120 = scmp.ne.s32.totalorder %s108, %s109
      %p121 = scmp.eq.s32.totalorder %s22, 1
      %p122 = por %p120, %p121
      %p124 = scmp.ne.s32.totalorder %s109, %s123
      %p125 = scmp.eq.s32.totalorder %s22, 0
      %p126 = por %p124, %p125
      %s127 = ssub.s32 %s23, %s35
      %s128 = ssub.s32 %s24, %s31
      %s129 = sor.u32 %s127, %s128
      %p130 = scmp.eq.s32.totalorder %s129, 0
      %s132 = sadd.s32 %s131, 1
      %s133 = scalar_select %p130, %s131, %s132
      %p136 = pneg %p130
      %p137 = scmp.eq.s32.totalorder %s16, 1
      %p138 = por %p136, %p137
      %p139 = scmp.ne.s32.totalorder %s131, %s134
      %p140 = scmp.eq.s32.totalorder %s16, 0
      %p141 = por %p139, %p140
      %p142 = scmp.ne.s32.totalorder %s131, %s134
      %p143 = scmp.eq.s32.totalorder %s21, 1
      %p144 = por %p142, %p143
      %p145 = scmp.ne.s32.totalorder %s134, %s135
      %p146 = scmp.eq.s32.totalorder %s21, 0
      %p147 = por %p145, %p146
      %p148 = scmp.ne.s32.totalorder %s134, %s135
      %p149 = scmp.eq.s32.totalorder %s22, 1
      %p150 = por %p148, %p149
      %p152 = scmp.ne.s32.totalorder %s135, %s151
      %p153 = scmp.eq.s32.totalorder %s22, 0
      %p154 = por %p152, %p153
      %p155 = scmp.le.s32.totalorder 1, %s16
      %p156 = scmp.lt.s32.totalorder %s16, 3
      %p157 = pnand %p155, %p156
      %p158 = pneg %p157
      // Predicated region
      $region9: #{tpu_custom_call.1} parent=5 // pred_check
        _
      $region10: #{tpu_custom_call.1} parent=5 // pred_check_branch
        %160 = sbr.rel (%p157) target = $region12
      $region11: #{tpu_custom_call.1} parent=5 // pred_region
        %s161 = ssub.s32 %s16, 1
        // Predicated region
        $region13: #{tpu_custom_call.1} parent=11 // pred_check
          %p162 = pneg %p77
        $region14: #{tpu_custom_call.1} parent=11 // pred_check_branch
          %164 = sbr.rel (%p162) target = $region16
        $region15: #{tpu_custom_call.1} parent=11 // pred_region
          _
        $region16: #{tpu_custom_call.1} parent=11 // pred_fallthru
          _
        // Predicated region
        $region17: #{tpu_custom_call.1} parent=11 // pred_check
          %p165 = pneg %p98
        $region18: #{tpu_custom_call.1} parent=11 // pred_check_branch
          %167 = sbr.rel (%p165) target = $region20
        $region19: #{tpu_custom_call.1} parent=11 // pred_region
          _
        $region20: #{tpu_custom_call.1} parent=11 // pred_fallthru
          _
        // Predicated region
        $region21: #{tpu_custom_call.1} parent=11 // pred_check
          %p168 = pneg %p119
        $region22: #{tpu_custom_call.1} parent=11 // pred_check_branch
          %170 = sbr.rel (%p168) target = $region24
        $region23: #{tpu_custom_call.1} parent=11 // pred_region
          _
        $region24: #{tpu_custom_call.1} parent=11 // pred_fallthru
          _
      $region12: #{tpu_custom_call.1} parent=5 // pred_fallthru
        _
      %p171 = scmp.lt.s32.totalorder %s16, 2
      // Predicated region
      $region25: #{tpu_custom_call.1} parent=5 // pred_check
        %p172 = pneg %p171
      $region26: #{tpu_custom_call.1} parent=5 // pred_check_branch
        %174 = sbr.rel (%p172) target = $region28
      $region27: #{tpu_custom_call.1} parent=5 // pred_region
        // Predicated region
        $region29: #{tpu_custom_call.1} parent=27 // pred_check
          %p175 = pneg %p50
        $region30: #{tpu_custom_call.1} parent=27 // pred_check_branch
          %177 = sbr.rel (%p175) target = $region32
        $region31: #{tpu_custom_call.1} parent=27 // pred_region
          %s178 = sand.u32 %s40, 1
          %s179 = scalar_lea.sflag [#allocation3], %s178
          %s180 = sand.u32 %s40, 1
          %s181 = smul.addr %s180, 64
          %s182 = scalar_lea.vmem [#allocation2], %s181
          %s183 = smul.u32 8, %s24
          %s185 = ssub.s32 1024, 1024
          %186 = vsyncadd %s179, %s185
          %s187 = smul.addr %s183, 2
          %s188 = smul.addr %s23, 16
          %s189 = sadd.s32 %s187, %s188
          %s190 = smul.addr %s189, 64
          %s191 = scalar_lea.hbm %s0, %s190
          %s192 = sshll.u32 %s182, 4
          %s193 = int_to_ptr.vmem [resolvable:$true] %s192
          %198 = dma.hbm_to_vmem [thread:$0]  %s191, 1024, %s193, %s179, 64, 64, 4
        $region32: #{tpu_custom_call.1} parent=27 // pred_fallthru
          _
      $region28: #{tpu_custom_call.1} parent=5 // pred_fallthru
        _
      %p199 = scmp.le.s32.totalorder 1, %s16
      %p200 = scmp.lt.s32.totalorder %s16, 3
      %p201 = pnand %p199, %p200
      %p202 = pneg %p201
      // Predicated region
      $region33: #{tpu_custom_call.1} parent=5 // pred_check
        _
      $region34: #{tpu_custom_call.1} parent=5 // pred_check_branch
        %204 = sbr.rel (%p201) target = $region36
      $region35: #{tpu_custom_call.1} parent=5 // pred_region
        %s205 = ssub.s32 %s16, 1
        %s206 = sand.u32 %s43, 1
        %s207 = scalar_lea.sflag [#allocation3], %s206
        %s208 = sand.u32 %s43, 1
        %s209 = smul.addr %s208, 64
        %s210 = scalar_lea.vmem [#allocation2], %s209
        // Predicated region
        $region37: #{tpu_custom_call.1} parent=35 // pred_check
          %p211 = pneg %p56
        $region38: #{tpu_custom_call.1} parent=35 // pred_check_branch
          %213 = sbr.rel (%p211) target = $region40
        $region39: #{tpu_custom_call.1} parent=35 // pred_region
          %214 = dma.done %s207, 1024
        $region40: #{tpu_custom_call.1} parent=35 // pred_fallthru
          _
        %s215 = sand.u32 %s43, 1
        %s216 = scalar_lea.sflag [#allocation3], %s215
        %s217 = sand.u32 %s43, 1
        %s218 = smul.addr %s217, 64
        %s219 = scalar_lea.vmem [#allocation2], %s218
        %p220 = pneg %p56
        %p221 = pneg %p53
        %p222 = pneg %p77
        %p223 = pneg %p74
        %p224 = pneg %p98
        %p225 = pneg %p95
        %p226 = pneg %p119
        %p227 = pneg %p116
        %p228 = pneg %p147
        %p229 = pneg %p144
        %s230 = sand.u32 %s134, 1
        %s231 = scalar_lea.sflag [#allocation4], %s230
        %s232 = sand.u32 %s134, 1
        %s233 = smul.addr %s232, 64
        %s234 = scalar_lea.vmem [#allocation5], %s233
        %s235 = smul.u32 8, %s26
        %s236 = smul.u32 8, %s26
        %v238 = vld [vmem:[%s210] sm:$0xf]
        %v239 = vld [vmem:[%s210 + $0x4] sm:$0xf]
        %v240 = vld [vmem:[%s210 + $0x8] sm:$0xf]
        %v241 = vld [vmem:[%s210 + $0xc] sm:$0xf]
        %v242 = vld [vmem:[%s210 + $0x10] sm:$0xf]
        %v243 = vld [vmem:[%s210 + $0x14] sm:$0xf]
        %v244 = vld [vmem:[%s210 + $0x18] sm:$0xf]
        %v245 = vld [vmem:[%s210 + $0x1c] sm:$0xf]
        %v246 = vld [vmem:[%s210 + $0x20] sm:$0xf]
        %v247 = vld [vmem:[%s210 + $0x24] sm:$0xf]
        %v248 = vld [vmem:[%s210 + $0x28] sm:$0xf]
        %v249 = vld [vmem:[%s210 + $0x2c] sm:$0xf]
        %v250 = vld [vmem:[%s210 + $0x30] sm:$0xf]
        %v251 = vld [vmem:[%s210 + $0x34] sm:$0xf]
        %v252 = vld [vmem:[%s210 + $0x38] sm:$0xf]
        %v253 = vld [vmem:[%s210 + $0x3c] sm:$0xf]
        %v254 = vld [vmem:[%s1] sm:$0xf]
        %v255 = vld [vmem:[%s1 + $0x4] sm:$0xf]
        %v256 = vld [vmem:[%s1 + $0x8] sm:$0xf]
        %v257 = vld [vmem:[%s1 + $0xc] sm:$0xf]
        %v258 = vld [vmem:[%s1 + $0x10] sm:$0xf]
        %v259 = vld [vmem:[%s1 + $0x14] sm:$0xf]
        %v260 = vld [vmem:[%s1 + $0x18] sm:$0xf]
        %v261 = vld [vmem:[%s1 + $0x1c] sm:$0xf]
        %v262 = vld [vmem:[%s1 + $0x20] sm:$0xf]
        %v263 = vld [vmem:[%s1 + $0x24] sm:$0xf]
        %v264 = vld [vmem:[%s1 + $0x28] sm:$0xf]
        %v265 = vld [vmem:[%s1 + $0x2c] sm:$0xf]
        %v266 = vld [vmem:[%s1 + $0x30] sm:$0xf]
        %v267 = vld [vmem:[%s1 + $0x34] sm:$0xf]
        %v268 = vld [vmem:[%s1 + $0x38] sm:$0xf]
        %v269 = vld [vmem:[%s1 + $0x3c] sm:$0xf]
        %v286 = vunpack.c.l.b16 %v238
        %v287 = vunpack.c.l.b16 %v239
        %v288 = vunpack.c.l.b16 %v240
        %v289 = vunpack.c.l.b16 %v241
        %v290 = vunpack.c.l.b16 %v242
        %v291 = vunpack.c.l.b16 %v243
        %v292 = vunpack.c.l.b16 %v244
        %v293 = vunpack.c.l.b16 %v245
        %v294 = vunpack.c.l.b16 %v246
        %v295 = vunpack.c.l.b16 %v247
        %v296 = vunpack.c.l.b16 %v248
        %v297 = vunpack.c.l.b16 %v249
        %v298 = vunpack.c.l.b16 %v250
        %v299 = vunpack.c.l.b16 %v251
        %v300 = vunpack.c.l.b16 %v252
        %v301 = vunpack.c.l.b16 %v253
        %v302 = vpack.c.b16 %v287, %v286
        %v303 = vpack.c.b16 %v289, %v288
        %v304 = vpack.c.b16 %v291, %v290
        %v305 = vpack.c.b16 %v293, %v292
        %v306 = vpack.c.b16 %v295, %v294
        %v307 = vpack.c.b16 %v297, %v296
        %v308 = vpack.c.b16 %v299, %v298
        %v309 = vpack.c.b16 %v301, %v300
        %v334 = vunpack.c.l.b16 %v254
        %v335 = vunpack.c.l.b16 %v255
        %v336 = vunpack.c.l.b16 %v256
        %v337 = vunpack.c.l.b16 %v257
        %v338 = vunpack.c.l.b16 %v258
        %v339 = vunpack.c.l.b16 %v259
        %v340 = vunpack.c.l.b16 %v260
        %v341 = vunpack.c.l.b16 %v261
        %v342 = vunpack.c.l.b16 %v262
        %v343 = vunpack.c.l.b16 %v263
        %v344 = vunpack.c.l.b16 %v264
        %v345 = vunpack.c.l.b16 %v265
        %v346 = vunpack.c.l.b16 %v266
        %v347 = vunpack.c.l.b16 %v267
        %v348 = vunpack.c.l.b16 %v268
        %v349 = vunpack.c.l.b16 %v269
        %v350 = vpack.c.b16 %v335, %v334
        %v351 = vpack.c.b16 %v337, %v336
        %v352 = vpack.c.b16 %v339, %v338
        %v353 = vpack.c.b16 %v341, %v340
        %v354 = vpack.c.b16 %v343, %v342
        %v355 = vpack.c.b16 %v345, %v344
        %v356 = vpack.c.b16 %v347, %v346
        %v357 = vpack.c.b16 %v349, %v348
        %366 = vmatprep.subr.bf16.mxu0 0
        %367 = vmatpush1.bf16.msra.mxu0 %v350
        %368 = vmatprep.subr.bf16.mxu0 0
        %369 = vmatpush1.bf16.msra.mxu0 %v351
        %370 = vmatprep.subr.bf16.mxu0 0
        %371 = vmatpush1.bf16.msra.mxu0 %v352
        %372 = vmatprep.subr.bf16.mxu0 0
        %373 = vmatpush1.bf16.msra.mxu0 %v353
        %374 = vmatprep.subr.bf16.mxu0 0
        %375 = vmatpush1.bf16.msra.mxu0 %v354
        %376 = vmatprep.subr.bf16.mxu0 0
        %377 = vmatpush1.bf16.msra.mxu0 %v355
        %378 = vmatprep.subr.bf16.mxu0 0
        %379 = vmatpush1.bf16.msra.mxu0 %v356
        %380 = vmatprep.subr.bf16.mxu0 0
        %381 = vmatpush1.bf16.msra.mxu0 %v357
        %382 = vmatprep.subr.bf16.mxu0 0
        %383 = vmatpush1.bf16.msra.mxu0 0
        %384 = vmatprep.subr.bf16.mxu0 0
        %385 = vmatpush1.bf16.msra.mxu0 0
        %386 = vmatprep.subr.bf16.mxu0 0
        %387 = vmatpush1.bf16.msra.mxu0 0
        %388 = vmatprep.subr.bf16.mxu0 0
        %389 = vmatpush1.bf16.msra.mxu0 0
        %390 = vmatprep.subr.bf16.mxu0 0
        %391 = vmatpush1.bf16.msra.mxu0 0
        %392 = vmatprep.subr.bf16.mxu0 0
        %393 = vmatpush1.bf16.msra.mxu0 0
        %394 = vmatprep.subr.bf16.mxu0 0
        %395 = vmatpush1.bf16.msra.mxu0 0
        %396 = vmatprep.subr.bf16.mxu0 0
        %397 = vmatpush1.bf16.msra.mxu0 0
        %398 = vmatprep.mubr.bf16.mxu0 0
        %399 = vmatmul.mubr.bf16.gmra.mrb[0].mxu0 %v302
        %v400 = vpop.f32.mrb[0].mxu0
        %v401 = vadd.f32 0.0, %v400
        %v402 = vpop.f32.mrb[0].mxu0
        %v403 = vpop.f32.mrb[0].mxu0
        %v404 = vadd.f32 0.0, %v403
        %v405 = vpop.f32.mrb[0].mxu0
        %406 = vmatprep.mubr.bf16.mxu0 0
        %407 = vmatmul.mubr.bf16.gmra.mrb[0].mxu0 %v303
        %v408 = vpop.f32.mrb[0].mxu0
        %v409 = vadd.f32 0.0, %v408
        %v410 = vpop.f32.mrb[0].mxu0
        %v411 = vpop.f32.mrb[0].mxu0
        %v412 = vadd.f32 0.0, %v411
        %v413 = vpop.f32.mrb[0].mxu0
        %414 = vmatprep.mubr.bf16.mxu0 0
        %415 = vmatmul.mubr.bf16.gmra.mrb[0].mxu0 %v304
        %v416 = vpop.f32.mrb[0].mxu0
        %v417 = vadd.f32 0.0, %v416
        %v418 = vpop.f32.mrb[0].mxu0
        %v419 = vpop.f32.mrb[0].mxu0
        %v420 = vadd.f32 0.0, %v419
        %v421 = vpop.f32.mrb[0].mxu0
        %422 = vmatprep.mubr.bf16.mxu0 0
        %423 = vmatmul.mubr.bf16.gmra.mrb[0].mxu0 %v305
        %v424 = vpop.f32.mrb[0].mxu0
        %v425 = vadd.f32 0.0, %v424
        %v426 = vpop.f32.mrb[0].mxu0
        %v427 = vpop.f32.mrb[0].mxu0
        %v428 = vadd.f32 0.0, %v427
        %v429 = vpop.f32.mrb[0].mxu0
        %430 = vmatprep.mubr.bf16.mxu0 0
        %431 = vmatmul.mubr.bf16.gmra.mrb[0].mxu0 %v306
        %v432 = vpop.f32.mrb[0].mxu0
        %v433 = vadd.f32 0.0, %v432
        %v434 = vpop.f32.mrb[0].mxu0
        %v435 = vpop.f32.mrb[0].mxu0
        %v436 = vadd.f32 0.0, %v435
        %v437 = vpop.f32.mrb[0].mxu0
        %438 = vmatprep.mubr.bf16.mxu0 0
        %439 = vmatmul.mubr.bf16.gmra.mrb[0].mxu0 %v307
        %v440 = vpop.f32.mrb[0].mxu0
        %v441 = vadd.f32 0.0, %v440
        %v442 = vpop.f32.mrb[0].mxu0
        %v443 = vpop.f32.mrb[0].mxu0
        %v444 = vadd.f32 0.0, %v443
        %v445 = vpop.f32.mrb[0].mxu0
        %446 = vmatprep.mubr.bf16.mxu0 0
        %447 = vmatmul.mubr.bf16.gmra.mrb[0].mxu0 %v308
        %v448 = vpop.f32.mrb[0].mxu0
        %v449 = vadd.f32 0.0, %v448
        %v450 = vpop.f32.mrb[0].mxu0
        %v451 = vpop.f32.mrb[0].mxu0
        %v452 = vadd.f32 0.0, %v451
        %v453 = vpop.f32.mrb[0].mxu0
        %454 = vmatprep.mubr.bf16.mxu0 0
        %455 = vmatmul.mubr.bf16.gmra.mrb[0].mxu0 %v309
        %v456 = vpop.f32.mrb[0].mxu0
        %v457 = vadd.f32 0.0, %v456
        %v458 = vpop.f32.mrb[0].mxu0
        %v459 = vpop.f32.mrb[0].mxu0
        %v460 = vadd.f32 0.0, %v459
        %v461 = vpop.f32.mrb[0].mxu0
        %462 = vdwg.mxu0
        %v463 = vld [vmem:[%s2] sm:$0x1]
        %v465 = vlaneseq
        %v466 = vshrl.u32 %v465, 7
        %v467 = vsub.s32 0, %v466
        %v468 = vrot.slane %v463, %v467
        %v470 = vmul.f32 %v401, %v468
        %v471 = vmul.f32 %v404, %v468
        %v472 = vmul.f32 %v409, %v468
        %v473 = vmul.f32 %v412, %v468
        %v474 = vmul.f32 %v417, %v468
        %v475 = vmul.f32 %v420, %v468
        %v476 = vmul.f32 %v425, %v468
        %v477 = vmul.f32 %v428, %v468
        %v478 = vmul.f32 %v433, %v468
        %v479 = vmul.f32 %v436, %v468
        %v480 = vmul.f32 %v441, %v468
        %v481 = vmul.f32 %v444, %v468
        %v482 = vmul.f32 %v449, %v468
        %v483 = vmul.f32 %v452, %v468
        %v484 = vmul.f32 %v457, %v468
        %v485 = vmul.f32 %v460, %v468
        %v486 = vld [vmem:[%s3] sm:$0x1]
        %v488 = vlaneseq
        %v489 = vshrl.u32 %v488, 7
        %v490 = vsub.s32 0, %v489
        %v491 = vrot.slane %v486, %v490
        %v493 = vadd.f32 %v470, %v491
        %v494 = vadd.f32 %v471, %v491
        %v495 = vadd.f32 %v472, %v491
        %v496 = vadd.f32 %v473, %v491
        %v497 = vadd.f32 %v474, %v491
        %v498 = vadd.f32 %v475, %v491
        %v499 = vadd.f32 %v476, %v491
        %v500 = vadd.f32 %v477, %v491
        %v501 = vadd.f32 %v478, %v491
        %v502 = vadd.f32 %v479, %v491
        %v503 = vadd.f32 %v480, %v491
        %v504 = vadd.f32 %v481, %v491
        %v505 = vadd.f32 %v482, %v491
        %v506 = vadd.f32 %v483, %v491
        %v507 = vadd.f32 %v484, %v491
        %v508 = vadd.f32 %v485, %v491
        %vm509 = vcmp.gt.f32.partialorder %v493, 1.0
        %vm510 = vcmp.gt.f32.partialorder %v494, 1.0
        %vm511 = vcmp.gt.f32.partialorder %v495, 1.0
        %vm512 = vcmp.gt.f32.partialorder %v496, 1.0
        %vm513 = vcmp.gt.f32.partialorder %v497, 1.0
        %vm514 = vcmp.gt.f32.partialorder %v498, 1.0
        %vm515 = vcmp.gt.f32.partialorder %v499, 1.0
        %vm516 = vcmp.gt.f32.partialorder %v500, 1.0
        %vm517 = vcmp.gt.f32.partialorder %v501, 1.0
        %vm518 = vcmp.gt.f32.partialorder %v502, 1.0
        %vm519 = vcmp.gt.f32.partialorder %v503, 1.0
        %vm520 = vcmp.gt.f32.partialorder %v504, 1.0
        %vm521 = vcmp.gt.f32.partialorder %v505, 1.0
        %vm522 = vcmp.gt.f32.partialorder %v506, 1.0
        %vm523 = vcmp.gt.f32.partialorder %v507, 1.0
        %vm524 = vcmp.gt.f32.partialorder %v508, 1.0
        %v525 = vsel %vm509, 1, 0
        %v526 = vsel %vm510, 1, 0
        %v527 = vsel %vm511, 1, 0
        %v528 = vsel %vm512, 1, 0
        %v529 = vsel %vm513, 1, 0
        %v530 = vsel %vm514, 1, 0
        %v531 = vsel %vm515, 1, 0
        %v532 = vsel %vm516, 1, 0
        %v533 = vsel %vm517, 1, 0
        %v534 = vsel %vm518, 1, 0
        %v535 = vsel %vm519, 1, 0
        %v536 = vsel %vm520, 1, 0
        %v537 = vsel %vm521, 1, 0
        %v538 = vsel %vm522, 1, 0
        %v539 = vsel %vm523, 1, 0
        %v540 = vsel %vm524, 1, 0
        %v541 = vcvt.s32.f32 %v525
        %v542 = vcvt.s32.f32 %v526
        %v543 = vcvt.s32.f32 %v527
        %v544 = vcvt.s32.f32 %v528
        %v545 = vcvt.s32.f32 %v529
        %v546 = vcvt.s32.f32 %v530
        %v547 = vcvt.s32.f32 %v531
        %v548 = vcvt.s32.f32 %v532
        %v549 = vcvt.s32.f32 %v533
        %v550 = vcvt.s32.f32 %v534
        %v551 = vcvt.s32.f32 %v535
        %v552 = vcvt.s32.f32 %v536
        %v553 = vcvt.s32.f32 %v537
        %v554 = vcvt.s32.f32 %v538
        %v555 = vcvt.s32.f32 %v539
        %v556 = vcvt.s32.f32 %v540
        %v557 = vpack.c.bf16 %v542, %v541
        %v558 = vpack.c.bf16 %v544, %v543
        %v559 = vpack.c.bf16 %v546, %v545
        %v560 = vpack.c.bf16 %v548, %v547
        %v561 = vpack.c.bf16 %v550, %v549
        %v562 = vpack.c.bf16 %v552, %v551
        %v563 = vpack.c.bf16 %v554, %v553
        %v564 = vpack.c.bf16 %v556, %v555
        %v573 = vunpack.c.l.b16 %v557
        %v574 = vunpack.c.h.b16 %v557
        %v575 = vunpack.c.l.b16 %v558
        %v576 = vunpack.c.h.b16 %v558
        %v577 = vunpack.c.l.b16 %v559
        %v578 = vunpack.c.h.b16 %v559
        %v579 = vunpack.c.l.b16 %v560
        %v580 = vunpack.c.h.b16 %v560
        %v581 = vunpack.c.l.b16 %v561
        %v582 = vunpack.c.h.b16 %v561
        %v583 = vunpack.c.l.b16 %v562
        %v584 = vunpack.c.h.b16 %v562
        %v585 = vunpack.c.l.b16 %v563
        %v586 = vunpack.c.h.b16 %v563
        %v587 = vunpack.c.l.b16 %v564
        %v588 = vunpack.c.h.b16 %v564
        %v589 = vpack.c.b16 %v573, %v573
        %v590 = vpack.c.b16 %v574, %v574
        %v591 = vpack.c.b16 %v575, %v575
        %v592 = vpack.c.b16 %v576, %v576
        %v593 = vpack.c.b16 %v577, %v577
        %v594 = vpack.c.b16 %v578, %v578
        %v595 = vpack.c.b16 %v579, %v579
        %v596 = vpack.c.b16 %v580, %v580
        %v597 = vpack.c.b16 %v581, %v581
        %v598 = vpack.c.b16 %v582, %v582
        %v599 = vpack.c.b16 %v583, %v583
        %v600 = vpack.c.b16 %v584, %v584
        %v601 = vpack.c.b16 %v585, %v585
        %v602 = vpack.c.b16 %v586, %v586
        %v603 = vpack.c.b16 %v587, %v587
        %v604 = vpack.c.b16 %v588, %v588
        %vm621 = vcmask 519168
        %622 = vst.msk [vmem:[%s234] sm:$0xf] %vm621, %v589
        %623 = vst.msk [vmem:[%s234 + $0x4] sm:$0xf] %vm621, %v590
        %624 = vst.msk [vmem:[%s234 + $0x8] sm:$0xf] %vm621, %v591
        %625 = vst.msk [vmem:[%s234 + $0xc] sm:$0xf] %vm621, %v592
        %626 = vst.msk [vmem:[%s234 + $0x10] sm:$0xf] %vm621, %v593
        %627 = vst.msk [vmem:[%s234 + $0x14] sm:$0xf] %vm621, %v594
        %628 = vst.msk [vmem:[%s234 + $0x18] sm:$0xf] %vm621, %v595
        %629 = vst.msk [vmem:[%s234 + $0x1c] sm:$0xf] %vm621, %v596
        %630 = vst.msk [vmem:[%s234 + $0x20] sm:$0xf] %vm621, %v597
        %631 = vst.msk [vmem:[%s234 + $0x24] sm:$0xf] %vm621, %v598
        %632 = vst.msk [vmem:[%s234 + $0x28] sm:$0xf] %vm621, %v599
        %633 = vst.msk [vmem:[%s234 + $0x2c] sm:$0xf] %vm621, %v600
        %634 = vst.msk [vmem:[%s234 + $0x30] sm:$0xf] %vm621, %v601
        %635 = vst.msk [vmem:[%s234 + $0x34] sm:$0xf] %vm621, %v602
        %636 = vst.msk [vmem:[%s234 + $0x38] sm:$0xf] %vm621, %v603
        %637 = vst.msk [vmem:[%s234 + $0x3c] sm:$0xf] %vm621, %v604
        %s638 = sand.u32 %s134, 1
        %s639 = scalar_lea.sflag [#allocation4], %s638
        %s640 = sand.u32 %s134, 1
        %s641 = smul.addr %s640, 64
        %s642 = scalar_lea.vmem [#allocation5], %s641
        // Predicated region
        $region41: #{tpu_custom_call.1} parent=35 // pred_check
          %p643 = pneg %p144
        $region42: #{tpu_custom_call.1} parent=35 // pred_check_branch
          %645 = sbr.rel (%p643) target = $region44
        $region43: #{tpu_custom_call.1} parent=35 // pred_region
          %s646 = smul.u32 8, %s26
          %s648 = ssub.s32 1024, 1024
          %649 = vsyncadd %s639, %s648
          %s650 = smul.addr %s646, 2
          %s651 = smul.addr %s25, 16
          %s652 = sadd.s32 %s650, %s651
          %s653 = smul.addr %s652, 64
          %s654 = scalar_lea.hbm %s4, %s653
          %s655 = sshll.u32 %s642, 4
          %s656 = int_to_ptr.vmem [resolvable:$true] %s655
          %661 = dma.vmem_to_hbm [thread:$0]  %s656, 1024, %s654, %s639, 64, 64, 4
        $region44: #{tpu_custom_call.1} parent=35 // pred_fallthru
          _
      $region36: #{tpu_custom_call.1} parent=5 // pred_fallthru
        _
      %p662 = scmp.le.s32.totalorder 2, %s16
      // Predicated region
      $region45: #{tpu_custom_call.1} parent=5 // pred_check
        %p663 = pneg %p662
      $region46: #{tpu_custom_call.1} parent=5 // pred_check_branch
        %665 = sbr.rel (%p663) target = $region48
      $region47: #{tpu_custom_call.1} parent=5 // pred_region
        %s666 = ssub.s32 %s16, 2
        // Predicated region
        $region49: #{tpu_custom_call.1} parent=47 // pred_check
          %p667 = pneg %p150
        $region50: #{tpu_custom_call.1} parent=47 // pred_check_branch
          %669 = sbr.rel (%p667) target = $region52
        $region51: #{tpu_custom_call.1} parent=47 // pred_region
          %s670 = sand.u32 %s135, 1
          %s671 = scalar_lea.sflag [#allocation4], %s670
          %s672 = sand.u32 %s135, 1
          %s673 = smul.addr %s672, 64
          %s674 = scalar_lea.vmem [#allocation5], %s673
          %675 = dma.done %s671, 1024
        $region52: #{tpu_custom_call.1} parent=47 // pred_fallthru
          _
      $region48: #{tpu_custom_call.1} parent=5 // pred_fallthru
        _
    $region6: #{tpu_custom_call.1} parent=1 // loop_footer
      %s20 = sadd.s32 1, %s16
    $region7: #{tpu_custom_call.1} parent=1 // loop_footer_branch
      %15 = sbr.rel target = $region3
    $region8: #{tpu_custom_call.1} parent=1 // loop_exit
      _
    %676 = vsyncpa [#allocation3], 1
    %s677 = scalar_lea.sflag [#allocation3], 1
    %678 = vsyncpa %s677, 1
    %679 = vsyncpa [#allocation4], 1
    %s680 = scalar_lea.sflag [#allocation4], 1
    %681 = vsyncpa %s680, 1

</llo_original>
